<compile_context>
chip_gen: v7x
topology: tpu7x:2x2x1
jax: 0.10.0
libtpu: 0.0.40
codegen_flags: <defaults>
</compile_context>

<pallas_src>
import functools
import math

import jax
import jax.numpy as jnp
from jax.experimental import pallas as pl
from jax.experimental.pallas import tpu as pltpu


# --------------------------------------------------------------------------
# Shared helpers
# --------------------------------------------------------------------------
def _mish(h):
    """Mish with a single transcendental.

    mish(h) = h * tanh(softplus(h)) == h * (e^2 + 2e) / (e^2 + 2e + 2), e=exp(h).
    exp is clamped at 20 so e^2 cannot overflow; for h > 20 the gating factor
    is exactly 1.0 in f32 either way, so results are unchanged.
    EUP cost: 1 exp + 1 approximate reciprocal (vs exp + log1p + tanh).
    """
    e = jnp.exp(jnp.minimum(h, 20.0))
    n = e * e + 2.0 * e
    return h * (n * pl.reciprocal(n + 2.0, approx=True))


def _mish_ref(h):
    return h * jnp.tanh(jax.nn.softplus(h))


def build_embedding_table(max_steps):
    """table[t] = cat(sin(t * 10**(d*4/63)), cos(...)) for d in [0, 64)."""
    steps = jnp.arange(max_steps, dtype=jnp.float32)[:, None]
    dims = jnp.arange(64, dtype=jnp.float32)[None, :]
    table = steps * 10.0 ** (dims * 4.0 / 63.0)
    return jnp.concatenate([jnp.sin(table), jnp.cos(table)], axis=1)   # (T, 128)


def _tile_condition(cond_blc, length):
    """torch: condition tiled along L (repeat + remainder).  The per-layer
    projection is position-wise, so tiling the raw condition before projecting
    equals torch's tile-after-projection."""
    lc = cond_blc.shape[1]
    if lc == length:
        return cond_blc
    reps, rem = length // lc, length % lc
    pieces = []
    if reps:
        pieces.append(jnp.tile(cond_blc, (1, reps, 1)))
    if rem:
        pieces.append(cond_blc[:, :rem, :])
    return jnp.concatenate(pieces, axis=1)


# --------------------------------------------------------------------------
# Kernel 1: DiffusionEmbedding (gather/lerp + Linear + Mish + Linear)
# --------------------------------------------------------------------------
def _step_embedding_kernel(low_ref, high_ref, frac_ref, table_ref,
                           w1_ref, b1_ref, w2_ref, b2_ref, o_ref):
    f32 = jnp.float32
    B = low_ref.shape[0]
    T = table_ref.shape[0]

    # Fused gather / lerp: one-hot rows x table on the MXU (exact 0/1 matmul).
    pos = jax.lax.broadcasted_iota(jnp.int32, (B, T), 1)
    oh_low = (pos == low_ref[...]).astype(f32)
    oh_high = (pos == high_ref[...]).astype(f32)
    table = table_ref[...]
    x_low = jnp.dot(oh_low, table, preferred_element_type=f32)
    x_high = jnp.dot(oh_high, table, preferred_element_type=f32)
    x = x_low + (x_high - x_low) * frac_ref[...]

    wdt = w1_ref.dtype
    h = jnp.dot(x.astype(wdt), w1_ref[...], preferred_element_type=f32) + b1_ref[...]
    h = _mish(h)
    y = jnp.dot(h.astype(wdt), w2_ref[...], preferred_element_type=f32) + b2_ref[...]
    o_ref[...] = y.astype(o_ref.dtype)


def diffusion_step_embedding(diffusion_step, params):
    """DiffusionEmbedding.forward; gather/lerp is done inside the kernel."""
    table = params["table"]
    w1, b1 = params["emb_w1"], params["emb_b1"]
    w2, b2 = params["emb_w2"], params["emb_b2"]
    T = table.shape[0]
    D = w1.shape[1]

    step = jnp.asarray(diffusion_step)
    if step.ndim == 0:
        step = step[None]
    if jnp.issubdtype(step.dtype, jnp.integer):
        low = jnp.clip(step.astype(jnp.int32), 0, T - 1)
        high = low
        frac = jnp.zeros(step.shape, jnp.float32)
    else:   # torch _lerp_embedding
        t = step.astype(jnp.float32)
        low = jnp.clip(jnp.floor(t).astype(jnp.int32), 0, T - 1)
        high = jnp.clip(jnp.ceil(t).astype(jnp.int32), 0, T - 1)
        frac = t - low.astype(jnp.float32)
    B = step.shape[0]

    # Lane-dense output: pad out-features to a multiple of 128 (no-op when the
    # channel size is already 128*k, as in the example below).
    Dp = 128 * pl.cdiv(D, 128)
    if Dp != D:
        pad = Dp - D
        w1 = jnp.pad(w1, ((0, 0), (0, pad)))
        b1 = jnp.pad(b1, ((0, 0), (0, pad)))
        w2 = jnp.pad(w2, ((0, pad), (0, pad)))
        b2 = jnp.pad(b2, ((0, 0), (0, pad)))

    out = pl.pallas_call(
        _step_embedding_kernel,
        out_shape=jax.ShapeDtypeStruct((B, Dp), jnp.float32),
        grid=(1,),
        in_specs=[
            pl.BlockSpec((B, 1), lambda i: (0, 0)),        # low index
            pl.BlockSpec((B, 1), lambda i: (0, 0)),        # high index
            pl.BlockSpec((B, 1), lambda i: (0, 0)),        # lerp fraction
            pl.BlockSpec((T, 128), lambda i: (0, 0)),      # sinusoidal table
            pl.BlockSpec((128, Dp), lambda i: (0, 0)),     # projection1 W (in,out)
            pl.BlockSpec((1, Dp), lambda i: (0, 0)),       # projection1 b
            pl.BlockSpec((Dp, Dp), lambda i: (0, 0)),      # projection2 W
            pl.BlockSpec((1, Dp), lambda i: (0, 0)),       # projection2 b
        ],
        out_specs=pl.BlockSpec((B, Dp), lambda i: (0, 0)),
        compiler_params=pltpu.CompilerParams(dimension_semantics=("arbitrary",)),
    )(low[:, None], high[:, None], frac[:, None], table, w1, b1, w2, b2)
    return out[:, :D]


# --------------------------------------------------------------------------
# Kernel 2: all ResidualBlocks + Denoiser head in one pallas_call
# --------------------------------------------------------------------------
def _residual_stack_kernel(x0_ref, emb_ref, cond_ref,
                           wdil_ref, bdil_ref, wcond_ref, bcond_ref,
                           wout_ref, bout_ref,
                           wskip_ref, bskip_ref, wproj_ref, bproj_ref,
                           o_ref,
                           x_sc, skip_sc,
                           *, dilation, n_layers):
    f32 = jnp.float32
    layer = pl.program_id(0)
    B, L, C = x_sc.shape
    C2 = 2 * C
    K = wdil_ref.shape[0]
    d = dilation
    cdtype = wdil_ref.dtype
    inv_sqrt2 = 1.0 / math.sqrt(2.0)

    @pl.when(layer == 0)
    def _init():
        x_sc[...] = x0_ref[...].astype(f32)
        skip_sc[...] = jnp.zeros_like(skip_sc)

    # Hoisted per-layer loads (re-used for every batch row).
    emb = emb_ref[...].astype(f32)                  # (B, C)
    wdil = [wdil_ref[k] for k in range(K)]          # K x (C, 2C)
    wcond = wcond_ref[...]
    wout = wout_ref[...]
    bdil = bdil_ref[...].astype(f32)                # (1, 2C)
    bcond = bcond_ref[...].astype(f32)
    bout = bout_ref[...].astype(f32)

    # 0/1 shift matrices implementing the dilated taps y[l + (k-1)*d] with
    # zero padding at the edges (iota+compare, applied as tiny MXU matmuls).
    row = jax.lax.broadcasted_iota(jnp.int32, (L, L), 0)
    col = jax.lax.broadcasted_iota(jnp.int32, (L, L), 1)
    shift = {}
    for k in range(K):
        off = (k - 1) * d
        if off != 0 and off not in shift:
            shift[off] = (col == row + off).astype(f32)

    # TODO(synk): B is unrolled (tiny here); for large B reshape to (B*L, C)
    # and do the tap shifts with pltpu.roll instead.
    for b in range(B):
        y = x_sc[b] + emb[b:b + 1, :]               # (L, C) f32

        # dilated Conv1d(C -> 2C, kernel K, dilation=d, padding=d)
        acc = jnp.zeros((L, C2), f32)
        for k in range(K):
            off = (k - 1) * d
            tap = y if off == 0 else jnp.dot(shift[off], y, preferred_element_type=f32)
            acc = acc + jnp.dot(tap.astype(cdtype), wdil[k], preferred_element_type=f32)
        after_dil = acc + bdil                      # (L, 2C)

        # conditioner projection (position-wise Linear Dc -> 2C)
        cond_b = cond_ref[b].astype(cdtype)         # (L, Dc)
        condition = jnp.dot(cond_b, wcond, preferred_element_type=f32) + bcond

        cr = after_dil + condition
        gate = cr[:, :C]
        filt = cr[:, C:]
        gated = jax.nn.sigmoid(gate) * jnp.tanh(filt)

        # output projection (1x1 conv == Linear C -> 2C)
        out2 = jnp.dot(gated.astype(cdtype), wout, preferred_element_type=f32) + bout
        residual = out2[:, :C]
        skip = out2[:, C:]

        x_sc[b] = (residual + y) * inv_sqrt2
        skip_sc[b] = skip_sc[b] + skip

    # Denoiser head, fused into the last grid step:
    # skip / sqrt(N) -> skip_projection -> Mish -> output_projection
    @pl.when(layer == n_layers - 1)
    def _head():
        res = (skip_sc[...] * (1.0 / math.sqrt(float(n_layers)))).reshape(B * L, C)
        h = jnp.dot(res.astype(wskip_ref.dtype), wskip_ref[...],
                    preferred_element_type=f32) + bskip_ref[...]
        h = _mish(h)
        o = jnp.dot(h.astype(wproj_ref.dtype), wproj_ref[...],
                    preferred_element_type=f32) + bproj_ref[...]
        o_ref[...] = o.reshape(B, L, C).astype(o_ref.dtype)


def _residual_stack_pallas(x_blc, emb, cond_blc,
                           wdil, bdil, wcond, bcond, wout, bout,
                           wskip, bskip, wproj, bproj, *, dilation):
    B, L, C = x_blc.shape
    Dc = cond_blc.shape[-1]
    N, K = wdil.shape[0], wdil.shape[1]
    C2 = 2 * C

    kernel = functools.partial(_residual_stack_kernel, dilation=dilation, n_layers=N)

    full3 = lambda i: (0, 0, 0)
    full2 = lambda i: (0, 0)
    layer4 = lambda i: (i, 0, 0, 0)
    layer3 = lambda i: (i, 0, 0)

    return pl.pallas_call(
        kernel,
        out_shape=jax.ShapeDtypeStruct((B, L, C), jnp.float32),
        grid=(N,),
        in_specs=[
            pl.BlockSpec((B, L, C), full3),            # x0 (read only at layer 0)
            pl.BlockSpec((B, C), full2),               # diffusion-step embedding
            pl.BlockSpec((B, L, Dc), full3),           # condition (channels-last)
            pl.BlockSpec((None, K, C, C2), layer4),    # dilated-conv taps, layer i
            pl.BlockSpec((None, 1, C2), layer3),       # dilated-conv bias
            pl.BlockSpec((None, Dc, C2), layer3),      # conditioner projection W
            pl.BlockSpec((None, 1, C2), layer3),       # conditioner projection b
            pl.BlockSpec((None, C, C2), layer3),       # output projection W
            pl.BlockSpec((None, 1, C2), layer3),       # output projection b
            pl.BlockSpec((C, C), full2),               # head: skip_projection W
            pl.BlockSpec((1, C), full2),               # head: skip_projection b
            pl.BlockSpec((C, C), full2),               # head: output_projection W
            pl.BlockSpec((1, C), full2),               # head: output_projection b
        ],
        out_specs=pl.BlockSpec((B, L, C), full3),
        scratch_shapes=[
            pltpu.VMEM((B, L, C), jnp.float32),        # carried x
            pltpu.VMEM((B, L, C), jnp.float32),        # skip accumulator
        ],
        compiler_params=pltpu.CompilerParams(
            dimension_semantics=("arbitrary",),        # sequential layer carry
        ),
    )(x_blc, emb, cond_blc, wdil, bdil, wcond, bcond, wout, bout,
      wskip, bskip, wproj, bproj)


# --------------------------------------------------------------------------
# Denoiser forward (two pallas_calls total) + parameter helpers
# --------------------------------------------------------------------------
@functools.partial(jax.jit, static_argnames=("dilation",))
def denoiser_forward(params, x, diffusion_step, condition_embedding, *, dilation=1):
    """Denoiser.forward.  x: (B, C, L), condition: (B, Dc, Lc) -> (B, C, L)."""
    B, C, L = x.shape
    emb = diffusion_step_embedding(diffusion_step, params)           # (b, C)
    if emb.shape[0] != B:
        emb = jnp.broadcast_to(emb, (B, C))
    x_blc = jnp.transpose(x, (0, 2, 1)).astype(jnp.float32)
    cond_blc = jnp.transpose(condition_embedding, (0, 2, 1)).astype(jnp.float32)
    cond_blc = _tile_condition(cond_blc, L)
    out_blc = _residual_stack_pallas(
        x_blc, emb, cond_blc,
        params["wdil"], params["bdil"], params["wcond"], params["bcond"],
        params["wout"], params["bout"],
        params["wskip"], params["bskip"], params["wproj"], params["bproj"],
        dilation=dilation)
    return jnp.transpose(out_blc, (0, 2, 1))


def cast_matmul_weights(params, dtype):
    """Cast only the big matmul operands (v6e/v7x: bf16 MXU, halves weight DMA);
    biases / table / elementwise math stay f32 (v5e has no bf16 VALU)."""
    out = dict(params)
    for name in ("emb_w1", "emb_w2", "wdil", "wcond", "wout", "wskip", "wproj"):
        out[name] = params[name].astype(dtype)
    return out


def init_denoiser_params(key, *, max_steps, channel_size, cond_dim, n_layers,
                         kernel_size=3, weights_dtype=jnp.float32):
    assert kernel_size == 3, (
        "ResidualBlock uses padding=dilation, length-preserving only for kernel_size==3")
    C, Dc, N, K = channel_size, cond_dim, n_layers, kernel_size
    ks = jax.random.split(key, 14)

    def unif(k, shape, fan_in):
        b = 1.0 / math.sqrt(float(fan_in))
        return jax.random.uniform(k, shape, jnp.float32, -b, b)

    params = {
        "table": build_embedding_table(max_steps),           # (T, 128) f32
        # DiffusionEmbedding (weights stored (in_features, out_features)):
        "emb_w1": unif(ks[0], (128, C), 128),
        "emb_b1": unif(ks[1], (1, C), 128),
        "emb_w2": unif(ks[2], (C, C), C),
        "emb_b2": unif(ks[3], (1, C), C),
        # ResidualBlock stacks (leading dim = layer).  Conv weights stored as
        # (layer, tap, in_channel, out_channel) == torch weight[:, :, k].T per tap.
        "wdil": unif(ks[4], (N, K, C, 2 * C), C * K),
        "bdil": unif(ks[5], (N, 1, 2 * C), C * K),
        "wcond": unif(ks[6], (N, Dc, 2 * C), Dc),
        "bcond": unif(ks[7], (N, 1, 2 * C), Dc),
        "wout": unif(ks[8], (N, C, 2 * C), C),
        "bout": unif(ks[9], (N, 1, 2 * C), C),
        # Denoiser head:
        "wskip": unif(ks[10], (C, C), C),
        "bskip": unif(ks[11], (1, C), C),
        "wproj": unif(ks[12], (C, C), C),
        "bproj": unif(ks[13], (1, C), C),
    }
    if weights_dtype != jnp.float32:
        params = cast_matmul_weights(params, weights_dtype)
    return params


# --------------------------------------------------------------------------
# Pure-JAX references (mirror the torch math)
# --------------------------------------------------------------------------
def _embedding_ref(diffusion_step, params):
    table = params["table"]
    T = table.shape[0]
    step = jnp.asarray(diffusion_step)
    if step.ndim == 0:
        step = step[None]
    if jnp.issubdtype(step.dtype, jnp.integer):
        x = table[step]
    else:
        t = step.astype(jnp.float32)
        low = jnp.clip(jnp.floor(t).astype(jnp.int32), 0, T - 1)
        high = jnp.clip(jnp.ceil(t).astype(jnp.int32), 0, T - 1)
        w = (t - low.astype(jnp.float32))[:, None]
        x = table[low] + (table[high] - table[low]) * w
    h = x @ params["emb_w1"].astype(jnp.float32) + params["emb_b1"]
    h = _mish_ref(h)
    return h @ params["emb_w2"].astype(jnp.float32) + params["emb_b2"]


def denoiser_reference(params, x, diffusion_step, condition_embedding, *, dilation=1):
    f32 = jnp.float32
    B, C, L = x.shape
    emb = _embedding_ref(diffusion_step, params)
    if emb.shape[0] != B:
        emb = jnp.broadcast_to(emb, (B, C))
    xt = jnp.transpose(x, (0, 2, 1)).astype(f32)                   # (B, L, C)
    cond = jnp.transpose(condition_embedding, (0, 2, 1)).astype(f32)
    cond = _tile_condition(cond, L)
    wdil = params["wdil"].astype(f32)
    N, K = wdil.shape[0], wdil.shape[1]
    d = dilation
    skip_sum = jnp.zeros((B, L, C), f32)
    for i in range(N):
        y = xt + emb[:, None, :]
        y_pad = jnp.pad(y, ((0, 0), (d, d), (0, 0)))
        acc = jnp.zeros((B, L, 2 * C), f32)
        for k in range(K):
            acc = acc + y_pad[:, k * d:k * d + L, :] @ wdil[i, k]
        after_dil = acc + params["bdil"][i].astype(f32)
        condition = cond @ params["wcond"][i].astype(f32) + params["bcond"][i].astype(f32)
        cr = after_dil + condition
        gate, filt = cr[..., :C], cr[..., C:]
        gated = jax.nn.sigmoid(gate) * jnp.tanh(filt)
        out2 = gated @ params["wout"][i].astype(f32) + params["bout"][i].astype(f32)
        residual, skip = out2[..., :C], out2[..., C:]
        xt = (residual + y) / math.sqrt(2.0)
        skip_sum = skip_sum + skip
    res = skip_sum / math.sqrt(N)
    h = res @ params["wskip"].astype(f32) + params["bskip"]
    h = _mish_ref(h)
    o = h @ params["wproj"].astype(f32) + params["bproj"]
    return jnp.transpose(o, (0, 2, 1))


# --------------------------------------------------------------------------
# main
# --------------------------------------------------------------------------
if __name__ == "__main__":
    # Small shapes consistent with the module (torch defaults: channel=256,
    # cond=192, 20 layers).  channel_size kept a multiple of 128 => lane-dense.
    B, L = 2, 16
    channel_size = 128
    cond_dim = 64
    n_layers = 3
    max_steps = 50
    dilation = 1

    key = jax.random.PRNGKey(0)
    kp, kx, kc, kstep = jax.random.split(key, 4)
    params = init_denoiser_params(
        kp, max_steps=max_steps, channel_size=channel_size,
        cond_dim=cond_dim, n_layers=n_layers)

    x = jax.random.normal(kx, (B, channel_size, L), dtype=jnp.float32)
    cond = jax.random.normal(kc, (B, cond_dim, L), dtype=jnp.float32)
    step_int = jax.random.randint(kstep, (B,), 0, max_steps, dtype=jnp.int32)
    step_flt = jnp.linspace(0.3, max_steps - 1.2, B, dtype=jnp.float32)

    # DiffusionEmbedding kernel: integer-gather and lerp paths vs pure-JAX ref.
    emb_int = jax.block_until_ready(diffusion_step_embedding(step_int, params))
    emb_flt = jax.block_until_ready(diffusion_step_embedding(step_flt, params))
    assert jnp.allclose(emb_int, _embedding_ref(step_int, params), atol=5e-3, rtol=5e-3)
    assert jnp.allclose(emb_flt, _embedding_ref(step_flt, params), atol=5e-3, rtol=5e-3)

    # Full Denoiser forward (f32 weights), integer-step path.
    out = jax.block_until_ready(
        denoiser_forward(params, x, step_int, cond, dilation=dilation))
    ref = denoiser_reference(params, x, step_int, cond, dilation=dilation)
    assert out.shape == (B, channel_size, L)
    assert bool(jnp.all(jnp.isfinite(out)))
    assert jnp.allclose(out, ref, atol=1e-2, rtol=1e-2)

    # Float-step (lerp) path, end to end.
    out_f = jax.block_until_ready(
        denoiser_forward(params, x, step_flt, cond, dilation=dilation))
    ref_f = denoiser_reference(params, x, step_flt, cond, dilation=dilation)
    assert jnp.allclose(out_f, ref_f, atol=1e-2, rtol=1e-2)

    # bf16 weights (v6e/v7x MXU-native; halves weight DMA); f32 math elsewhere.
    params_bf16 = cast_matmul_weights(params, jnp.bfloat16)
    out_bf = jax.block_until_ready(
        denoiser_forward(params_bf16, x, step_int, cond, dilation=dilation))
    assert jnp.allclose(out_bf, ref, atol=5e-2, rtol=5e-2)

    print("KERNEL_OK")
</pallas_src>

<mosaic_0001>
module attributes {stable_mosaic.version = 11 : i64} {
  func.func @_step_embedding_kernel(%arg0: i32, %arg1: memref<2x1xi32, #tpu.memory_space<vmem>>, %arg2: memref<2x1xi32, #tpu.memory_space<vmem>>, %arg3: memref<2x1xf32, #tpu.memory_space<vmem>>, %arg4: memref<50x128xf32, #tpu.memory_space<vmem>>, %arg5: memref<128x128xf32, #tpu.memory_space<vmem>>, %arg6: memref<1x128xf32, #tpu.memory_space<vmem>>, %arg7: memref<128x128xf32, #tpu.memory_space<vmem>>, %arg8: memref<1x128xf32, #tpu.memory_space<vmem>>, %arg9: memref<2x128xf32, #tpu.memory_space<vmem>>) attributes {dimension_semantics = [#tpu.dimension_semantics<arbitrary>], iteration_bounds = array<i64: 1>, scalar_prefetch = 0 : i64, scratch_operands = 0 : i64, tpu.core_type = #tpu.core_type<tc>, window_params = [{pipeline_mode = #tpu.pipeline_mode<synchronous>, transform_indices = @transform_0, window_bounds = array<i64: 2, 1>}, {pipeline_mode = #tpu.pipeline_mode<synchronous>, transform_indices = @transform_1, window_bounds = array<i64: 2, 1>}, {pipeline_mode = #tpu.pipeline_mode<synchronous>, transform_indices = @transform_2, window_bounds = array<i64: 2, 1>}, {pipeline_mode = #tpu.pipeline_mode<synchronous>, transform_indices = @transform_3, window_bounds = array<i64: 50, 128>}, {pipeline_mode = #tpu.pipeline_mode<synchronous>, transform_indices = @transform_4, window_bounds = array<i64: 128, 128>}, {pipeline_mode = #tpu.pipeline_mode<synchronous>, transform_indices = @transform_5, window_bounds = array<i64: 1, 128>}, {pipeline_mode = #tpu.pipeline_mode<synchronous>, transform_indices = @transform_6, window_bounds = array<i64: 128, 128>}, {pipeline_mode = #tpu.pipeline_mode<synchronous>, transform_indices = @transform_7, window_bounds = array<i64: 1, 128>}, {pipeline_mode = #tpu.pipeline_mode<synchronous>, transform_indices = @transform_8, window_bounds = array<i64: 2, 128>}]} {
    %0 = tpu.iota {dimensions = array<i32: 1>} : vector<2x50xi32>
    %c0 = arith.constant 0 : index
    %c0_0 = arith.constant 0 : index
    %1 = vector.load %arg1[%c0, %c0_0] : memref<2x1xi32, #tpu.memory_space<vmem>>, vector<2x1xi32>
    %2 = vector.broadcast %1 : vector<2x1xi32> to vector<2x50xi32>
    %3 = arith.cmpi eq, %0, %2 : vector<2x50xi32>
    %4 = arith.extui %3 : vector<2x50xi1> to vector<2x50xi32>
    %5 = arith.sitofp %4 : vector<2x50xi32> to vector<2x50xf32>
    %c0_1 = arith.constant 0 : index
    %c0_2 = arith.constant 0 : index
    %6 = vector.load %arg2[%c0_1, %c0_2] : memref<2x1xi32, #tpu.memory_space<vmem>>, vector<2x1xi32>
    %7 = vector.broadcast %6 : vector<2x1xi32> to vector<2x50xi32>
    %8 = arith.cmpi eq, %0, %7 : vector<2x50xi32>
    %9 = arith.extui %8 : vector<2x50xi1> to vector<2x50xi32>
    %10 = arith.sitofp %9 : vector<2x50xi32> to vector<2x50xf32>
    %c0_3 = arith.constant 0 : index
    %c0_4 = arith.constant 0 : index
    %11 = vector.load %arg4[%c0_3, %c0_4] : memref<50x128xf32, #tpu.memory_space<vmem>>, vector<50x128xf32>
    %cst = arith.constant dense<0.000000e+00> : vector<2x128xf32>
    %12 = tpu.matmul %5, %11, %cst {dimension_numbers = #tpu.dot_dimension_numbers<[1], [0], [0], [1], [0, 0, 1, 1], [], []>} : vector<2x50xf32>, vector<50x128xf32>, vector<2x128xf32> -> vector<2x128xf32>
    %cst_5 = arith.constant dense<0.000000e+00> : vector<2x128xf32>
    %13 = tpu.matmul %10, %11, %cst_5 {dimension_numbers = #tpu.dot_dimension_numbers<[1], [0], [0], [1], [0, 0, 1, 1], [], []>} : vector<2x50xf32>, vector<50x128xf32>, vector<2x128xf32> -> vector<2x128xf32>
    %14 = arith.subf %13, %12 : vector<2x128xf32>
    %c0_6 = arith.constant 0 : index
    %c0_7 = arith.constant 0 : index
    %15 = vector.load %arg3[%c0_6, %c0_7] : memref<2x1xf32, #tpu.memory_space<vmem>>, vector<2x1xf32>
    %16 = vector.broadcast %15 : vector<2x1xf32> to vector<2x128xf32>
    %17 = arith.mulf %14, %16 : vector<2x128xf32>
    %18 = arith.addf %12, %17 : vector<2x128xf32>
    %c0_8 = arith.constant 0 : index
    %c0_9 = arith.constant 0 : index
    %19 = vector.load %arg5[%c0_8, %c0_9] : memref<128x128xf32, #tpu.memory_space<vmem>>, vector<128x128xf32>
    %cst_10 = arith.constant dense<0.000000e+00> : vector<2x128xf32>
    %20 = tpu.matmul %18, %19, %cst_10 {dimension_numbers = #tpu.dot_dimension_numbers<[1], [0], [0], [1], [0, 0, 1, 1], [], []>} : vector<2x128xf32>, vector<128x128xf32>, vector<2x128xf32> -> vector<2x128xf32>
    %c0_11 = arith.constant 0 : index
    %c0_12 = arith.constant 0 : index
    %21 = vector.load %arg6[%c0_11, %c0_12] : memref<1x128xf32, #tpu.memory_space<vmem>>, vector<1x128xf32>
    %22 = vector.broadcast %21 : vector<1x128xf32> to vector<2x128xf32>
    %23 = arith.addf %20, %22 : vector<2x128xf32>
    %cst_13 = arith.constant 2.000000e+01 : f32
    %24 = vector.broadcast %cst_13 : f32 to vector<2x128xf32>
    %25 = arith.minimumf %23, %24 : vector<2x128xf32>
    %26 = math.exp %25 : vector<2x128xf32>
    %27 = arith.mulf %26, %26 : vector<2x128xf32>
    %cst_14 = arith.constant 2.000000e+00 : f32
    %28 = vector.broadcast %cst_14 : f32 to vector<2x128xf32>
    %29 = arith.mulf %28, %26 : vector<2x128xf32>
    %30 = arith.addf %27, %29 : vector<2x128xf32>
    %cst_15 = arith.constant 2.000000e+00 : f32
    %31 = vector.broadcast %cst_15 : f32 to vector<2x128xf32>
    %32 = arith.addf %30, %31 : vector<2x128xf32>
    %33 = tpu.reciprocal %32 {approx = true} : vector<2x128xf32> -> vector<2x128xf32>
    %34 = arith.mulf %30, %33 : vector<2x128xf32>
    %35 = arith.mulf %23, %34 : vector<2x128xf32>
    %c0_16 = arith.constant 0 : index
    %c0_17 = arith.constant 0 : index
    %36 = vector.load %arg7[%c0_16, %c0_17] : memref<128x128xf32, #tpu.memory_space<vmem>>, vector<128x128xf32>
    %cst_18 = arith.constant dense<0.000000e+00> : vector<2x128xf32>
    %37 = tpu.matmul %35, %36, %cst_18 {dimension_numbers = #tpu.dot_dimension_numbers<[1], [0], [0], [1], [0, 0, 1, 1], [], []>} : vector<2x128xf32>, vector<128x128xf32>, vector<2x128xf32> -> vector<2x128xf32>
    %c0_19 = arith.constant 0 : index
    %c0_20 = arith.constant 0 : index
    %38 = vector.load %arg8[%c0_19, %c0_20] : memref<1x128xf32, #tpu.memory_space<vmem>>, vector<1x128xf32>
    %39 = vector.broadcast %38 : vector<1x128xf32> to vector<2x128xf32>
    %40 = arith.addf %37, %39 : vector<2x128xf32>
    %c0_21 = arith.constant 0 : index
    %c0_22 = arith.constant 0 : index
    %41 = vector.load %arg9[%c0_21, %c0_22] : memref<2x128xf32, #tpu.memory_space<vmem>>, vector<2x128xf32>
    tpu.vector_store %arg9[%c0_21, %c0_22], %40 {strides = array<i32>} : memref<2x128xf32, #tpu.memory_space<vmem>>, vector<2x128xf32>,
    return
  }
  func.func @transform_0(%arg0: i32) -> (i32, i32) {
    %c0_i32 = arith.constant 0 : i32
    %c0_i32_0 = arith.constant 0 : i32
    %c0_i32_1 = arith.constant 0 : i32
    return %c0_i32, %c0_i32_0 : i32, i32
  }
  func.func @transform_1(%arg0: i32) -> (i32, i32) {
    %c0_i32 = arith.constant 0 : i32
    %c0_i32_0 = arith.constant 0 : i32
    %c0_i32_1 = arith.constant 0 : i32
    return %c0_i32, %c0_i32_0 : i32, i32
  }
  func.func @transform_2(%arg0: i32) -> (i32, i32) {
    %c0_i32 = arith.constant 0 : i32
    %c0_i32_0 = arith.constant 0 : i32
    %c0_i32_1 = arith.constant 0 : i32
    return %c0_i32, %c0_i32_0 : i32, i32
  }
  func.func @transform_3(%arg0: i32) -> (i32, i32) {
    %c0_i32 = arith.constant 0 : i32
    %c0_i32_0 = arith.constant 0 : i32
    %c0_i32_1 = arith.constant 0 : i32
    return %c0_i32, %c0_i32_0 : i32, i32
  }
  func.func @transform_4(%arg0: i32) -> (i32, i32) {
    %c0_i32 = arith.constant 0 : i32
    %c0_i32_0 = arith.constant 0 : i32
    %c0_i32_1 = arith.constant 0 : i32
    return %c0_i32, %c0_i32_0 : i32, i32
  }
  func.func @transform_5(%arg0: i32) -> (i32, i32) {
    %c0_i32 = arith.constant 0 : i32
    %c0_i32_0 = arith.constant 0 : i32
    %c0_i32_1 = arith.constant 0 : i32
    return %c0_i32, %c0_i32_0 : i32, i32
  }
  func.func @transform_6(%arg0: i32) -> (i32, i32) {
    %c0_i32 = arith.constant 0 : i32
    %c0_i32_0 = arith.constant 0 : i32
    %c0_i32_1 = arith.constant 0 : i32
    return %c0_i32, %c0_i32_0 : i32, i32
  }
  func.func @transform_7(%arg0: i32) -> (i32, i32) {
    %c0_i32 = arith.constant 0 : i32
    %c0_i32_0 = arith.constant 0 : i32
    %c0_i32_1 = arith.constant 0 : i32
    return %c0_i32, %c0_i32_0 : i32, i32
  }
  func.func @transform_8(%arg0: i32) -> (i32, i32) {
    %c0_i32 = arith.constant 0 : i32
    %c0_i32_0 = arith.constant 0 : i32
    %c0_i32_1 = arith.constant 0 : i32
    return %c0_i32, %c0_i32_0 : i32, i32
  }
}

</mosaic_0001>

<llo_original>
// kernel: tpu_custom_call.1
$region0: #{tpu_custom_call.1}
  #allocation0 [shape = 'u32[]', space=smem, size = 0x4, offset = 0x4, fixed_abs, tag = 'smem constant byte address 0x4 - core index']
  #allocation1 [shape = 'u32[144,128]{1,0:T(1,128)}', space=vmem, size = 0x12000, scoped, tag = 'internal scratch']
  %s0 = inlined_call_operand.vmem [shape: s32[2,1], index: 0, kind: input, shape index: {}]
  %s1 = inlined_call_operand.vmem [shape: s32[2,1], index: 1, kind: input, shape index: {}]
  %s2 = inlined_call_operand.vmem [shape: f32[2,1], index: 2, kind: input, shape index: {}]
  %s3 = inlined_call_operand.hbm [shape: f32[50,128], index: 3, kind: input, shape index: {}]
  %s4 = inlined_call_operand.hbm [shape: f32[128,128], index: 4, kind: input, shape index: {}]
  %s5 = inlined_call_operand.vmem [shape: f32[1,128], index: 5, kind: input, shape index: {}]
  %s6 = inlined_call_operand.hbm [shape: f32[128,128], index: 6, kind: input, shape index: {}]
  %s7 = inlined_call_operand.vmem [shape: f32[1,128], index: 7, kind: input, shape index: {}]
  %s8 = inlined_call_operand.hbm [shape: f32[2,128], index: 8, kind: output, shape index: {}]
  %s9 = sld [smem:[#allocation0]]
  $region54: #{tpu_custom_call.1} parent=0
    _
  %s11 = ssub.s32 1, %s9
  %s12 = scalar_select 0, %s11, %s9
  $region1: #{tpu_custom_call.1} parent=0
    #allocation2 [shape = 'u8[28672]{0}', space=vmem, size = 0x7000, scoped, tag = 'input window, operand 3, single buffered']
    #allocation3 [shape = 's32[1]{0}', space=sflag, size = 0x4, scoped, tag = 'scoped memory for tpu_custom_call.1']
    #allocation4 [shape = 's32[1]{0}', space=sflag, size = 0x4, scoped, tag = 'scoped memory for tpu_custom_call.1']
    #allocation5 [shape = 'u8[65536]{0}', space=vmem, size = 0x10000, scoped, tag = 'input window, operand 4, single buffered']
    #allocation6 [shape = 's32[1]{0}', space=sflag, size = 0x4, scoped, tag = 'scoped memory for tpu_custom_call.1']
    #allocation7 [shape = 'u8[65536]{0}', space=vmem, size = 0x10000, scoped, tag = 'input window, operand 6, single buffered']
    #allocation8 [shape = 'u8[1024]{0}', space=vmem, size = 0x400, scoped, tag = 'output window, operand 0, single buffered']
    %13 = vsyncpa [#allocation3], 0
    %14 = vsyncpa [#allocation6], 0
    %15 = vsyncpa [#allocation4], 0
    // Predicated region
    $region2: #{tpu_custom_call.1} parent=1 // pred_check
      _
    $region3: #{tpu_custom_call.1} parent=1 // pred_check_branch
      %17 = sbr.rel (0) target = $region5
    $region4: #{tpu_custom_call.1} parent=1 // pred_region
      _
    $region5: #{tpu_custom_call.1} parent=1 // pred_fallthru
      _
    // Predicated region
    $region6: #{tpu_custom_call.1} parent=1 // pred_check
      _
    $region7: #{tpu_custom_call.1} parent=1 // pred_check_branch
      %19 = sbr.rel (0) target = $region9
    $region8: #{tpu_custom_call.1} parent=1 // pred_region
      _
    $region9: #{tpu_custom_call.1} parent=1 // pred_fallthru
      _
    // Predicated region
    $region10: #{tpu_custom_call.1} parent=1 // pred_check
      _
    $region11: #{tpu_custom_call.1} parent=1 // pred_check_branch
      %21 = sbr.rel (0) target = $region13
    $region12: #{tpu_custom_call.1} parent=1 // pred_region
      _
    $region13: #{tpu_custom_call.1} parent=1 // pred_fallthru
      _
    // Predicated region
    $region14: #{tpu_custom_call.1} parent=1 // pred_check
      _
    $region15: #{tpu_custom_call.1} parent=1 // pred_check_branch
      %23 = sbr.rel (0) target = $region17
    $region16: #{tpu_custom_call.1} parent=1 // pred_region
      %s25 = ssub.s32 896, 896
      %26 = vsyncadd [#allocation3], %s25
      %s27 = sshll.u32 [#allocation2], 4
      %s28 = int_to_ptr.vmem [resolvable:$true] %s27
      %33 = dma.hbm_to_vmem [thread:$0]  %s3, 896, %s28, [#allocation3], 128, 128, 8
    $region17: #{tpu_custom_call.1} parent=1 // pred_fallthru
      _
    // Predicated region
    $region18: #{tpu_custom_call.1} parent=1 // pred_check
      _
    $region19: #{tpu_custom_call.1} parent=1 // pred_check_branch
      %35 = sbr.rel (0) target = $region21
    $region20: #{tpu_custom_call.1} parent=1 // pred_region
      %s37 = ssub.s32 2048, 2048
      %38 = vsyncadd [#allocation6], %s37
      %s39 = sshll.u32 [#allocation5], 4
      %s40 = int_to_ptr.vmem [resolvable:$true] %s39
      %45 = dma.hbm_to_vmem [thread:$0]  %s4, 2048, %s40, [#allocation6], 128, 128, 8
    $region21: #{tpu_custom_call.1} parent=1 // pred_fallthru
      _
    // Predicated region
    $region22: #{tpu_custom_call.1} parent=1 // pred_check
      _
    $region23: #{tpu_custom_call.1} parent=1 // pred_check_branch
      %47 = sbr.rel (0) target = $region25
    $region24: #{tpu_custom_call.1} parent=1 // pred_region
      _
    $region25: #{tpu_custom_call.1} parent=1 // pred_fallthru
      _
    // Predicated region
    $region26: #{tpu_custom_call.1} parent=1 // pred_check
      _
    $region27: #{tpu_custom_call.1} parent=1 // pred_check_branch
      %49 = sbr.rel (0) target = $region29
    $region28: #{tpu_custom_call.1} parent=1 // pred_region
      %s51 = ssub.s32 2048, 2048
      %52 = vsyncadd [#allocation6], %s51
      %s53 = sshll.u32 [#allocation7], 4
      %s54 = int_to_ptr.vmem [resolvable:$true] %s53
      %59 = dma.hbm_to_vmem [thread:$0]  %s6, 2048, %s54, [#allocation6], 128, 128, 8
    $region29: #{tpu_custom_call.1} parent=1 // pred_fallthru
      _
    // Predicated region
    $region30: #{tpu_custom_call.1} parent=1 // pred_check
      _
    $region31: #{tpu_custom_call.1} parent=1 // pred_check_branch
      %61 = sbr.rel (0) target = $region33
    $region32: #{tpu_custom_call.1} parent=1 // pred_region
      _
    $region33: #{tpu_custom_call.1} parent=1 // pred_fallthru
      _
    // Predicated region
    $region34: #{tpu_custom_call.1} parent=1 // pred_check
      _
    $region35: #{tpu_custom_call.1} parent=1 // pred_check_branch
      %63 = sbr.rel (0) target = $region37
    $region36: #{tpu_custom_call.1} parent=1 // pred_region
      %64 = dma.done [#allocation3], 896
    $region37: #{tpu_custom_call.1} parent=1 // pred_fallthru
      _
    // Predicated region
    $region38: #{tpu_custom_call.1} parent=1 // pred_check
      _
    $region39: #{tpu_custom_call.1} parent=1 // pred_check_branch
      %66 = sbr.rel (0) target = $region41
    $region40: #{tpu_custom_call.1} parent=1 // pred_region
      %67 = dma.done [#allocation6], 2048
    $region41: #{tpu_custom_call.1} parent=1 // pred_fallthru
      _
    // Predicated region
    $region42: #{tpu_custom_call.1} parent=1 // pred_check
      _
    $region43: #{tpu_custom_call.1} parent=1 // pred_check_branch
      %69 = sbr.rel (0) target = $region45
    $region44: #{tpu_custom_call.1} parent=1 // pred_region
      %70 = dma.done [#allocation6], 2048
    $region45: #{tpu_custom_call.1} parent=1 // pred_fallthru
      _
    %v71 = vlaneseq
    %v72 = vand.u32 %v71, 127
    %v73 = vld [vmem:[%s0] sm:$0x3]
    %74 = vset.pattern.permute.xlu0 0
    %75 = vperm.xlu0 %74, %v73
    %v76 = vpop.permute.xlu0 %75
    %vm77 = vcmp.eq.s32.totalorder %v72, %v76
    %v78 = vsel %vm77, 1, 0
    %v79 = vcvt.s32.f32 %v78
    %v80 = vld [vmem:[%s1] sm:$0x3]
    %81 = vset.pattern.permute.xlu0 0
    %82 = vperm.xlu0 %81, %v80
    %v83 = vpop.permute.xlu0 %82
    %vm84 = vcmp.eq.s32.totalorder %v72, %v83
    %v85 = vsel %vm84, 1, 0
    %v86 = vcvt.s32.f32 %v85
    %v87 = vld [vmem:[#allocation2] sm:$0xff]
    %v88 = vld [vmem:[#allocation2 + $0x8] sm:$0xff]
    %v89 = vld [vmem:[#allocation2 + $0x10] sm:$0xff]
    %v90 = vld [vmem:[#allocation2 + $0x18] sm:$0xff]
    %v91 = vld [vmem:[#allocation2 + $0x20] sm:$0xff]
    %v92 = vld [vmem:[#allocation2 + $0x28] sm:$0xff]
    %v93 = vld [vmem:[#allocation2 + $0x30] sm:$0x3]
    %vm94 = vcmask 408576
    %v96 = vsel %vm94, %v79, 0
    %vm98 = vcmask 1041408
    %v100 = vsel %vm98, %v93, 0
    %102 = vmatprep.subr.mxu0 0.0
    %103 = vmatpush1.msra.mxu0 %v87
    %104 = vmatprep.subr.mxu0 0.0
    %105 = vmatpush1.msra.mxu0 %v88
    %106 = vmatprep.subr.mxu0 0.0
    %107 = vmatpush1.msra.mxu0 %v89
    %108 = vmatprep.subr.mxu0 0.0
    %109 = vmatpush1.msra.mxu0 %v90
    %110 = vmatprep.subr.mxu0 0.0
    %111 = vmatpush1.msra.mxu0 %v91
    %112 = vmatprep.subr.mxu0 0.0
    %113 = vmatpush1.msra.mxu0 %v92
    %114 = vmatprep.subr.mxu0 0.0
    %115 = vmatpush1.msra.mxu0 %v100
    %116 = vmatprep.subr.mxu0 0.0
    %117 = vmatpush1.msra.mxu0 0.0
    %118 = vmatprep.subr.mxu0 0.0
    %119 = vmatpush1.msra.mxu0 0.0
    %120 = vmatprep.subr.mxu0 0.0
    %121 = vmatpush1.msra.mxu0 0.0
    %122 = vmatprep.subr.mxu0 0.0
    %123 = vmatpush1.msra.mxu0 0.0
    %124 = vmatprep.subr.mxu0 0.0
    %125 = vmatpush1.msra.mxu0 0.0
    %126 = vmatprep.subr.mxu0 0.0
    %127 = vmatpush1.msra.mxu0 0.0
    %128 = vmatprep.subr.mxu0 0.0
    %129 = vmatpush1.msra.mxu0 0.0
    %130 = vmatprep.subr.mxu0 0.0
    %131 = vmatpush1.msra.mxu0 0.0
    %132 = vmatprep.subr.mxu0 0.0
    %133 = vmatpush1.msra.mxu0 0.0
    %134 = vmatprep.subr.mxu0 0.0
    %135 = vmatpush1.msra.mxu0 0.0
    %136 = vmatprep.subr.mxu0 0.0
    %137 = vmatpush1.msra.mxu0 0.0
    %138 = vmatprep.subr.mxu0 0.0
    %139 = vmatpush1.msra.mxu0 0.0
    %140 = vmatprep.subr.mxu0 0.0
    %141 = vmatpush1.msra.mxu0 0.0
    %142 = vmatprep.subr.mxu0 0.0
    %143 = vmatpush1.msra.mxu0 0.0
    %144 = vmatprep.subr.mxu0 0.0
    %145 = vmatpush1.msra.mxu0 0.0
    %146 = vmatprep.subr.mxu0 0.0
    %147 = vmatpush1.msra.mxu0 0.0
    %148 = vmatprep.subr.mxu0 0.0
    %149 = vmatpush1.msra.mxu0 0.0
    %150 = vmatprep.subr.mxu0 0.0
    %151 = vmatpush1.msra.mxu0 0.0
    %152 = vmatprep.subr.mxu0 0.0
    %153 = vmatpush1.msra.mxu0 0.0
    %154 = vmatprep.subr.mxu0 0.0
    %155 = vmatpush1.msra.mxu0 0.0
    %156 = vmatprep.subr.mxu0 0.0
    %157 = vmatpush1.msra.mxu0 0.0
    %158 = vmatprep.subr.mxu0 0.0
    %159 = vmatpush1.msra.mxu0 0.0
    %160 = vmatprep.subr.mxu0 0.0
    %161 = vmatpush1.msra.mxu0 0.0
    %162 = vmatprep.subr.mxu0 0.0
    %163 = vmatpush1.msra.mxu0 0.0
    %164 = vmatprep.subr.mxu0 0.0
    %165 = vmatpush1.msra.mxu0 0.0
    %166 = vmatprep.mubr.f32.mxu0 0.0
    %167 = vmatmul.mubr.f32.gmra.mrb[0].mxu0 %v96
    %v168 = vpop.f32.mrb[0].mxu0
    %v169 = vadd.f32 0.0, %v168
    %v170 = vpop.f32.mrb[0].mxu0
    %171 = vdwg.mxu0
    %v173 = vsel %vm94, %v86, 0
    %175 = vmatprep.subr.mxu0 0.0
    %176 = vmatpush1.msra.mxu0 %v87
    %177 = vmatprep.subr.mxu0 0.0
    %178 = vmatpush1.msra.mxu0 %v88
    %179 = vmatprep.subr.mxu0 0.0
    %180 = vmatpush1.msra.mxu0 %v89
    %181 = vmatprep.subr.mxu0 0.0
    %182 = vmatpush1.msra.mxu0 %v90
    %183 = vmatprep.subr.mxu0 0.0
    %184 = vmatpush1.msra.mxu0 %v91
    %185 = vmatprep.subr.mxu0 0.0
    %186 = vmatpush1.msra.mxu0 %v92
    %187 = vmatprep.subr.mxu0 0.0
    %188 = vmatpush1.msra.mxu0 %v100
    %189 = vmatprep.subr.mxu0 0.0
    %190 = vmatpush1.msra.mxu0 0.0
    %191 = vmatprep.subr.mxu0 0.0
    %192 = vmatpush1.msra.mxu0 0.0
    %193 = vmatprep.subr.mxu0 0.0
    %194 = vmatpush1.msra.mxu0 0.0
    %195 = vmatprep.subr.mxu0 0.0
    %196 = vmatpush1.msra.mxu0 0.0
    %197 = vmatprep.subr.mxu0 0.0
    %198 = vmatpush1.msra.mxu0 0.0
    %199 = vmatprep.subr.mxu0 0.0
    %200 = vmatpush1.msra.mxu0 0.0
    %201 = vmatprep.subr.mxu0 0.0
    %202 = vmatpush1.msra.mxu0 0.0
    %203 = vmatprep.subr.mxu0 0.0
    %204 = vmatpush1.msra.mxu0 0.0
    %205 = vmatprep.subr.mxu0 0.0
    %206 = vmatpush1.msra.mxu0 0.0
    %207 = vmatprep.subr.mxu0 0.0
    %208 = vmatpush1.msra.mxu0 0.0
    %209 = vmatprep.subr.mxu0 0.0
    %210 = vmatpush1.msra.mxu0 0.0
    %211 = vmatprep.subr.mxu0 0.0
    %212 = vmatpush1.msra.mxu0 0.0
    %213 = vmatprep.subr.mxu0 0.0
    %214 = vmatpush1.msra.mxu0 0.0
    %215 = vmatprep.subr.mxu0 0.0
    %216 = vmatpush1.msra.mxu0 0.0
    %217 = vmatprep.subr.mxu0 0.0
    %218 = vmatpush1.msra.mxu0 0.0
    %219 = vmatprep.subr.mxu0 0.0
    %220 = vmatpush1.msra.mxu0 0.0
    %221 = vmatprep.subr.mxu0 0.0
    %222 = vmatpush1.msra.mxu0 0.0
    %223 = vmatprep.subr.mxu0 0.0
    %224 = vmatpush1.msra.mxu0 0.0
    %225 = vmatprep.subr.mxu0 0.0
    %226 = vmatpush1.msra.mxu0 0.0
    %227 = vmatprep.subr.mxu0 0.0
    %228 = vmatpush1.msra.mxu0 0.0
    %229 = vmatprep.subr.mxu0 0.0
    %230 = vmatpush1.msra.mxu0 0.0
    %231 = vmatprep.subr.mxu0 0.0
    %232 = vmatpush1.msra.mxu0 0.0
    %233 = vmatprep.subr.mxu0 0.0
    %234 = vmatpush1.msra.mxu0 0.0
    %235 = vmatprep.subr.mxu0 0.0
    %236 = vmatpush1.msra.mxu0 0.0
    %237 = vmatprep.subr.mxu0 0.0
    %238 = vmatpush1.msra.mxu0 0.0
    %239 = vmatprep.mubr.f32.mxu0 0.0
    %240 = vmatmul.mubr.f32.gmra.mrb[0].mxu0 %v173
    %v241 = vpop.f32.mrb[0].mxu0
    %v242 = vadd.f32 0.0, %v241
    %v243 = vpop.f32.mrb[0].mxu0
    %244 = vdwg.mxu0
    %v245 = vsub.f32 %v242, %v169
    %v246 = vld [vmem:[%s2] sm:$0x3]
    %248 = vset.pattern.permute.xlu0 0
    %249 = vperm.xlu0 %248, %v246
    %v250 = vpop.permute.xlu0 %249
    %v252 = vmul.f32 %v245, %v250
    %v253 = vadd.f32 %v169, %v252
    %v254 = vld [vmem:[#allocation5] sm:$0xff]
    %v255 = vld [vmem:[#allocation5 + $0x8] sm:$0xff]
    %v256 = vld [vmem:[#allocation5 + $0x10] sm:$0xff]
    %v257 = vld [vmem:[#allocation5 + $0x18] sm:$0xff]
    %v258 = vld [vmem:[#allocation5 + $0x20] sm:$0xff]
    %v259 = vld [vmem:[#allocation5 + $0x28] sm:$0xff]
    %v260 = vld [vmem:[#allocation5 + $0x30] sm:$0xff]
    %v261 = vld [vmem:[#allocation5 + $0x38] sm:$0xff]
    %v262 = vld [vmem:[#allocation5 + $0x40] sm:$0xff]
    %v263 = vld [vmem:[#allocation5 + $0x48] sm:$0xff]
    %v264 = vld [vmem:[#allocation5 + $0x50] sm:$0xff]
    %v265 = vld [vmem:[#allocation5 + $0x58] sm:$0xff]
    %v266 = vld [vmem:[#allocation5 + $0x60] sm:$0xff]
    %v267 = vld [vmem:[#allocation5 + $0x68] sm:$0xff]
    %v268 = vld [vmem:[#allocation5 + $0x70] sm:$0xff]
    %v269 = vld [vmem:[#allocation5 + $0x78] sm:$0xff]
    %v270 = vld [vmem:[%s5] sm:$0x1]
    %v272 = vlaneseq
    %v273 = vshrl.u32 %v272, 7
    %v274 = vsub.s32 0, %v273
    %v275 = vrot.slane %v270, %v274
    %277 = vmatprep.subr.mxu0 0.0
    %278 = vmatpush1.msra.mxu0 %v254
    %279 = vmatprep.subr.mxu0 0.0
    %280 = vmatpush1.msra.mxu0 %v255
    %281 = vmatprep.subr.mxu0 0.0
    %282 = vmatpush1.msra.mxu0 %v256
    %283 = vmatprep.subr.mxu0 0.0
    %284 = vmatpush1.msra.mxu0 %v257
    %285 = vmatprep.subr.mxu0 0.0
    %286 = vmatpush1.msra.mxu0 %v258
    %287 = vmatprep.subr.mxu0 0.0
    %288 = vmatpush1.msra.mxu0 %v259
    %289 = vmatprep.subr.mxu0 0.0
    %290 = vmatpush1.msra.mxu0 %v260
    %291 = vmatprep.subr.mxu0 0.0
    %292 = vmatpush1.msra.mxu0 %v261
    %293 = vmatprep.subr.mxu0 0.0
    %294 = vmatpush1.msra.mxu0 %v262
    %295 = vmatprep.subr.mxu0 0.0
    %296 = vmatpush1.msra.mxu0 %v263
    %297 = vmatprep.subr.mxu0 0.0
    %298 = vmatpush1.msra.mxu0 %v264
    %299 = vmatprep.subr.mxu0 0.0
    %300 = vmatpush1.msra.mxu0 %v265
    %301 = vmatprep.subr.mxu0 0.0
    %302 = vmatpush1.msra.mxu0 %v266
    %303 = vmatprep.subr.mxu0 0.0
    %304 = vmatpush1.msra.mxu0 %v267
    %305 = vmatprep.subr.mxu0 0.0
    %306 = vmatpush1.msra.mxu0 %v268
    %307 = vmatprep.subr.mxu0 0.0
    %308 = vmatpush1.msra.mxu0 %v269
    %309 = vmatprep.subr.mxu0 0.0
    %310 = vmatpush1.msra.mxu0 0.0
    %311 = vmatprep.subr.mxu0 0.0
    %312 = vmatpush1.msra.mxu0 0.0
    %313 = vmatprep.subr.mxu0 0.0
    %314 = vmatpush1.msra.mxu0 0.0
    %315 = vmatprep.subr.mxu0 0.0
    %316 = vmatpush1.msra.mxu0 0.0
    %317 = vmatprep.subr.mxu0 0.0
    %318 = vmatpush1.msra.mxu0 0.0
    %319 = vmatprep.subr.mxu0 0.0
    %320 = vmatpush1.msra.mxu0 0.0
    %321 = vmatprep.subr.mxu0 0.0
    %322 = vmatpush1.msra.mxu0 0.0
    %323 = vmatprep.subr.mxu0 0.0
    %324 = vmatpush1.msra.mxu0 0.0
    %325 = vmatprep.subr.mxu0 0.0
    %326 = vmatpush1.msra.mxu0 0.0
    %327 = vmatprep.subr.mxu0 0.0
    %328 = vmatpush1.msra.mxu0 0.0
    %329 = vmatprep.subr.mxu0 0.0
    %330 = vmatpush1.msra.mxu0 0.0
    %331 = vmatprep.subr.mxu0 0.0
    %332 = vmatpush1.msra.mxu0 0.0
    %333 = vmatprep.subr.mxu0 0.0
    %334 = vmatpush1.msra.mxu0 0.0
    %335 = vmatprep.subr.mxu0 0.0
    %336 = vmatpush1.msra.mxu0 0.0
    %337 = vmatprep.subr.mxu0 0.0
    %338 = vmatpush1.msra.mxu0 0.0
    %339 = vmatprep.subr.mxu0 0.0
    %340 = vmatpush1.msra.mxu0 0.0
    %341 = vmatprep.mubr.f32.mxu0 0.0
    %342 = vmatmul.mubr.f32.gmra.mrb[0].mxu0 %v253
    %v343 = vpop.f32.mrb[0].mxu0
    %v344 = vadd.f32 %v275, %v343
    %v345 = vpop.f32.mrb[0].mxu0
    %346 = vdwg.mxu0
    %v347 = vmin.f32 %v344, 20.0
    %v348 = vmul.f32 %v347, 1.442695
    %v349 = vpow.pop %v348
    %v350 = vmul.f32 %v349, %v349
    %v351 = vmul.f32 %v349, 2.0
    %v352 = vadd.f32 %v350, %v351
    %v353 = vadd.f32 %v352, 2.0
    %v354 = vrcp.pop %v353
    %v355 = vmul.f32 %v352, %v354
    %v356 = vmul.f32 %v344, %v355
    %v357 = vld [vmem:[#allocation7] sm:$0xff]
    %v358 = vld [vmem:[#allocation7 + $0x8] sm:$0xff]
    %v359 = vld [vmem:[#allocation7 + $0x10] sm:$0xff]
    %v360 = vld [vmem:[#allocation7 + $0x18] sm:$0xff]
    %v361 = vld [vmem:[#allocation7 + $0x20] sm:$0xff]
    %v362 = vld [vmem:[#allocation7 + $0x28] sm:$0xff]
    %v363 = vld [vmem:[#allocation7 + $0x30] sm:$0xff]
    %v364 = vld [vmem:[#allocation7 + $0x38] sm:$0xff]
    %v365 = vld [vmem:[#allocation7 + $0x40] sm:$0xff]
    %v366 = vld [vmem:[#allocation7 + $0x48] sm:$0xff]
    %v367 = vld [vmem:[#allocation7 + $0x50] sm:$0xff]
    %v368 = vld [vmem:[#allocation7 + $0x58] sm:$0xff]
    %v369 = vld [vmem:[#allocation7 + $0x60] sm:$0xff]
    %v370 = vld [vmem:[#allocation7 + $0x68] sm:$0xff]
    %v371 = vld [vmem:[#allocation7 + $0x70] sm:$0xff]
    %v372 = vld [vmem:[#allocation7 + $0x78] sm:$0xff]
    %v373 = vld [vmem:[%s7] sm:$0x1]
    %v375 = vlaneseq
    %v376 = vshrl.u32 %v375, 7
    %v377 = vsub.s32 0, %v376
    %v378 = vrot.slane %v373, %v377
    %380 = vmatprep.subr.mxu0 0.0
    %381 = vmatpush1.msra.mxu0 %v357
    %382 = vmatprep.subr.mxu0 0.0
    %383 = vmatpush1.msra.mxu0 %v358
    %384 = vmatprep.subr.mxu0 0.0
    %385 = vmatpush1.msra.mxu0 %v359
    %386 = vmatprep.subr.mxu0 0.0
    %387 = vmatpush1.msra.mxu0 %v360
    %388 = vmatprep.subr.mxu0 0.0
    %389 = vmatpush1.msra.mxu0 %v361
    %390 = vmatprep.subr.mxu0 0.0
    %391 = vmatpush1.msra.mxu0 %v362
    %392 = vmatprep.subr.mxu0 0.0
    %393 = vmatpush1.msra.mxu0 %v363
    %394 = vmatprep.subr.mxu0 0.0
    %395 = vmatpush1.msra.mxu0 %v364
    %396 = vmatprep.subr.mxu0 0.0
    %397 = vmatpush1.msra.mxu0 %v365
    %398 = vmatprep.subr.mxu0 0.0
    %399 = vmatpush1.msra.mxu0 %v366
    %400 = vmatprep.subr.mxu0 0.0
    %401 = vmatpush1.msra.mxu0 %v367
    %402 = vmatprep.subr.mxu0 0.0
    %403 = vmatpush1.msra.mxu0 %v368
    %404 = vmatprep.subr.mxu0 0.0
    %405 = vmatpush1.msra.mxu0 %v369
    %406 = vmatprep.subr.mxu0 0.0
    %407 = vmatpush1.msra.mxu0 %v370
    %408 = vmatprep.subr.mxu0 0.0
    %409 = vmatpush1.msra.mxu0 %v371
    %410 = vmatprep.subr.mxu0 0.0
    %411 = vmatpush1.msra.mxu0 %v372
    %412 = vmatprep.subr.mxu0 0.0
    %413 = vmatpush1.msra.mxu0 0.0
    %414 = vmatprep.subr.mxu0 0.0
    %415 = vmatpush1.msra.mxu0 0.0
    %416 = vmatprep.subr.mxu0 0.0
    %417 = vmatpush1.msra.mxu0 0.0
    %418 = vmatprep.subr.mxu0 0.0
    %419 = vmatpush1.msra.mxu0 0.0
    %420 = vmatprep.subr.mxu0 0.0
    %421 = vmatpush1.msra.mxu0 0.0
    %422 = vmatprep.subr.mxu0 0.0
    %423 = vmatpush1.msra.mxu0 0.0
    %424 = vmatprep.subr.mxu0 0.0
    %425 = vmatpush1.msra.mxu0 0.0
    %426 = vmatprep.subr.mxu0 0.0
    %427 = vmatpush1.msra.mxu0 0.0
    %428 = vmatprep.subr.mxu0 0.0
    %429 = vmatpush1.msra.mxu0 0.0
    %430 = vmatprep.subr.mxu0 0.0
    %431 = vmatpush1.msra.mxu0 0.0
    %432 = vmatprep.subr.mxu0 0.0
    %433 = vmatpush1.msra.mxu0 0.0
    %434 = vmatprep.subr.mxu0 0.0
    %435 = vmatpush1.msra.mxu0 0.0
    %436 = vmatprep.subr.mxu0 0.0
    %437 = vmatpush1.msra.mxu0 0.0
    %438 = vmatprep.subr.mxu0 0.0
    %439 = vmatpush1.msra.mxu0 0.0
    %440 = vmatprep.subr.mxu0 0.0
    %441 = vmatpush1.msra.mxu0 0.0
    %442 = vmatprep.subr.mxu0 0.0
    %443 = vmatpush1.msra.mxu0 0.0
    %444 = vmatprep.mubr.f32.mxu0 0.0
    %445 = vmatmul.mubr.f32.gmra.mrb[0].mxu0 %v356
    %v446 = vpop.f32.mrb[0].mxu0
    %v447 = vadd.f32 %v378, %v446
    %v448 = vpop.f32.mrb[0].mxu0
    %449 = vdwg.mxu0
    %450 = vst [vmem:[#allocation8] sm:$0x3] %v447
    // Predicated region
    $region46: #{tpu_custom_call.1} parent=1 // pred_check
      _
    $region47: #{tpu_custom_call.1} parent=1 // pred_check_branch
      %452 = sbr.rel (0) target = $region49
    $region48: #{tpu_custom_call.1} parent=1 // pred_region
      %s454 = ssub.s32 32, 32
      %455 = vsyncadd [#allocation4], %s454
      %s457 = sshll.u32 [#allocation8], 4
      %s458 = int_to_ptr.vmem [resolvable:$true] %s457
      %460 = dma.vmem_to_hbm [thread:$0]  %s458, 32, %s8, [#allocation4]
    $region49: #{tpu_custom_call.1} parent=1 // pred_fallthru
      _
    // Predicated region
    $region50: #{tpu_custom_call.1} parent=1 // pred_check
      _
    $region51: #{tpu_custom_call.1} parent=1 // pred_check_branch
      %462 = sbr.rel (0) target = $region53
    $region52: #{tpu_custom_call.1} parent=1 // pred_region
      %463 = dma.done [#allocation4], 32
    $region53: #{tpu_custom_call.1} parent=1 // pred_fallthru
      _
    %464 = vsyncpa [#allocation3], 1
    %465 = vsyncpa [#allocation6], 1
    %466 = vsyncpa [#allocation4], 1

</llo_original>
